<compile_context>
chip_gen: v7x
topology: tpu7x:2x2x1
jax: 0.10.0
libtpu: 0.0.40
codegen_flags: <defaults>
</compile_context>

<pallas_src>
import functools

import jax
import jax.numpy as jnp
from jax.experimental import pallas as pl
from jax.experimental.pallas import tpu as pltpu

LEAKY_SLOPE = 0.2
PAD = 128     # lane-dense padding for hidden feature dims (multiple of 128)
IN_PAD = 8    # sublane-friendly padding for the (tiny) input feature dim


def _round_up(x, m):
    return ((x + m - 1) // m) * m


# ----------------------------------------------------------------------------
# Fused kernel: layer0 (narrow-K Linear + LeakyReLU), hidden Linears +
# LeakyReLU, final Linear.  Everything stays in VMEM/vregs between layers.
# ----------------------------------------------------------------------------
def _wavenet_fused_kernel(x_ref, w0_ref, w_ref, b_ref, o_ref, *,
                          num_layers, num_classes):
    """
    x_ref  : (tile_b, IN_PAD)        input tile (features zero-padded to 8)
    w0_ref : (IN_PAD, PAD)           first-layer weight, pre-transposed, bf16
    w_ref  : (L-1, PAD, PAD)         remaining weights, pre-transposed, bf16
    b_ref  : (L, 1, PAD)             all biases, f32
    o_ref  : (tile_b, num_classes)   logits at natural class width
    """
    # Layer 0: Linear(K=IN_PAD) + LeakyReLU(0.2).  bf16 operands, f32 accum.
    h = jnp.dot(x_ref[...].astype(jnp.bfloat16), w0_ref[...],
                preferred_element_type=jnp.float32) + b_ref[0]
    h = jnp.maximum(h, LEAKY_SLOPE * h)

    # Hidden layers 1 .. L-2: Linear + LeakyReLU(0.2).  Static unrolled loop
    # over the (small, compile-time) layer count; weights stay VMEM-resident.
    for l in range(1, num_layers - 1):
        h = jnp.dot(h.astype(jnp.bfloat16), w_ref[l - 1],
                    preferred_element_type=jnp.float32) + b_ref[l]
        h = jnp.maximum(h, LEAKY_SLOPE * h)

    # Final fc: plain Linear, no activation.
    h = jnp.dot(h.astype(jnp.bfloat16), w_ref[num_layers - 2],
                preferred_element_type=jnp.float32) + b_ref[num_layers - 1]

    o_ref[...] = h[:, :num_classes].astype(o_ref.dtype)


# ----------------------------------------------------------------------------
# One-time parameter packing (hoisted out of the per-call path).
# ----------------------------------------------------------------------------
def pack_wavenet_params(weights, biases):
    """weights[l]: (out_l, in_l) PyTorch layout; biases[l]: (out_l,).

    Returns:
      w0     : (IN_PAD, PAD)   bf16, w0[:in_0, :out_0]            = weights[0].T
      w_rest : (L-1, PAD, PAD) bf16, w_rest[l-1, :in_l, :out_l]   = weights[l].T
      b_all  : (L, 1, PAD)     f32,  b_all[l, 0, :out_l]          = biases[l]
    """
    L = len(weights)
    assert L >= 2, "WaveNET always has at least one hidden layer + fin_fc"
    out0, in0 = weights[0].shape
    assert in0 <= IN_PAD and all(w.shape[0] <= PAD and w.shape[1] <= PAD
                                 for w in weights)

    w0 = jnp.zeros((IN_PAD, PAD), jnp.bfloat16)
    w0 = w0.at[:in0, :out0].set(weights[0].T.astype(jnp.bfloat16))

    w_rest = jnp.zeros((L - 1, PAD, PAD), jnp.bfloat16)
    b_all = jnp.zeros((L, 1, PAD), jnp.float32)
    b_all = b_all.at[0, 0, :out0].set(biases[0].astype(jnp.float32))
    for l in range(1, L):
        out_l, in_l = weights[l].shape
        w_rest = w_rest.at[l - 1, :in_l, :out_l].set(
            weights[l].T.astype(jnp.bfloat16))
        b_all = b_all.at[l, 0, :out_l].set(biases[l].astype(jnp.float32))
    return w0, w_rest, b_all


# ----------------------------------------------------------------------------
# Forward pass wrapper.
# ----------------------------------------------------------------------------
def wavenet_forward(x, w0, w_rest, b_all, num_classes, *,
                    max_tile_b=2048, min_parallel_steps=2):
    """x: (B, in_features) f32.  Returns logits (B, num_classes) f32."""
    B, in_features = x.shape
    L = int(w_rest.shape[0]) + 1
    assert in_features <= IN_PAD and num_classes <= PAD

    # Step count: at least `min_parallel_steps` (so the parallel batch axis
    # shards across v7x's 2 TensorCores) when the batch is big enough, and
    # enough steps that each tile is <= ~max_tile_b rows; never more steps
    # than 8-row groups.  tile_b derived from the step count keeps padding
    # waste < 8 rows per step.
    n_steps = max(1, min(pl.cdiv(B, 8),
                         max(min_parallel_steps, pl.cdiv(B, max_tile_b))))
    tile_b = _round_up(pl.cdiv(B, n_steps), 8)
    b_pad = n_steps * tile_b

    # Narrow input padding only (features 5 -> 8 lanes, batch to b_pad rows).
    if b_pad != B or in_features != IN_PAD:
        x_in = jnp.zeros((b_pad, IN_PAD), x.dtype).at[:B, :in_features].set(x)
    else:
        x_in = x

    grid = (n_steps,)

    # Advisory cost: flops as actually executed on padded shapes; bytes are the
    # real HBM traffic of this call.
    flops = 2 * b_pad * (IN_PAD * PAD + (L - 1) * PAD * PAD)
    bytes_accessed = (x_in.size * x_in.dtype.itemsize
                      + w0.size * w0.dtype.itemsize
                      + w_rest.size * w_rest.dtype.itemsize
                      + b_all.size * b_all.dtype.itemsize
                      + b_pad * num_classes * 4)

    out_pad = pl.pallas_call(
        functools.partial(_wavenet_fused_kernel,
                          num_layers=L, num_classes=num_classes),
        out_shape=jax.ShapeDtypeStruct((b_pad, num_classes), x.dtype),
        grid_spec=pltpu.PrefetchScalarGridSpec(
            num_scalar_prefetch=0,
            grid=grid,
            in_specs=[
                pl.BlockSpec((tile_b, IN_PAD), lambda i: (i, 0)),    # activations
                pl.BlockSpec((IN_PAD, PAD), lambda i: (0, 0)),       # layer-0 W
                pl.BlockSpec((L - 1, PAD, PAD), lambda i: (0, 0, 0)),  # other Ws
                pl.BlockSpec((L, 1, PAD), lambda i: (0, 0, 0)),      # biases
            ],
            out_specs=pl.BlockSpec((tile_b, num_classes), lambda i: (i, 0)),
        ),
        compiler_params=pltpu.CompilerParams(
            dimension_semantics=("parallel",)),
        cost_estimate=pl.CostEstimate(
            flops=flops, transcendentals=0, bytes_accessed=bytes_accessed),
    )(x_in, w0, w_rest, b_all)

    return out_pad[:B] if b_pad != B else out_pad


# ----------------------------------------------------------------------------
# Pure-JAX f32 reference (matches the PyTorch forward semantics).
# ----------------------------------------------------------------------------
def _reference(x, weights, biases):
    h = x
    for l in range(len(weights) - 1):
        h = h @ weights[l].T + biases[l]
        h = jnp.where(h >= 0, h, LEAKY_SLOPE * h)
    return h @ weights[-1].T + biases[-1]


if __name__ == "__main__":
    key = jax.random.PRNGKey(0)

    # WaveNET(block=FcLayer, planes=[2,2,2], nodes=[32,64,32], num_classes=3)
    in_nodes = 5
    planes = [2, 2, 2]
    nodes = [32, 64, 32]
    num_classes = 3
    batch = 16

    # Build layer (out, in) dims exactly like make_layer() does.
    dims = []
    cur = in_nodes
    for p, n in zip(planes, nodes):
        dims.append((n, cur))
        cur = n
        for _ in range(1, p):
            dims.append((n, cur))
    dims.append((num_classes, cur))          # fin_fc (no activation)

    # Deterministic init: kaiming-normal-ish weights (fan_out), Linear-default bias.
    weights, biases = [], []
    for (out_f, in_f) in dims:
        key, kw, kb = jax.random.split(key, 3)
        std = (2.0 / out_f) ** 0.5
        w = std * jax.random.normal(kw, (out_f, in_f), dtype=jnp.float32)
        bound = 1.0 / (in_f ** 0.5)
        b = jax.random.uniform(kb, (out_f,), minval=-bound, maxval=bound,
                               dtype=jnp.float32)
        weights.append(w)
        biases.append(b)

    key, kx = jax.random.split(key)
    x = jax.random.normal(kx, (batch, in_nodes), dtype=jnp.float32)

    # One-time packing (hoisted out of the forward path).
    w0, w_rest, b_all = pack_wavenet_params(weights, biases)

    out = wavenet_forward(x, w0, w_rest, b_all, num_classes)
    out = jax.block_until_ready(out)

    ref = _reference(x, weights, biases)
    assert out.shape == (batch, num_classes), out.shape
    # bf16 matmul operands + f32 accumulation: loosened tolerance vs f32 ref.
    max_err = float(jnp.max(jnp.abs(out - ref)))
    scale = max(float(jnp.max(jnp.abs(ref))), 1.0)
    assert max_err <= 5e-2 * scale, (max_err, scale)
    print("KERNEL_OK")
</pallas_src>

<mosaic_0001>
module attributes {stable_mosaic.version = 11 : i64} {
  func.func @_wavenet_fused_kernel(%arg0: i32, %arg1: memref<8x8xf32, #tpu.memory_space<vmem>>, %arg2: memref<8x128xbf16, #tpu.memory_space<vmem>>, %arg3: memref<6x128x128xbf16, #tpu.memory_space<vmem>>, %arg4: memref<7x1x128xf32, #tpu.memory_space<vmem>>, %arg5: memref<8x3xf32, #tpu.memory_space<vmem>>) attributes {dimension_semantics = [#tpu.dimension_semantics<parallel>], iteration_bounds = array<i64: 2>, scalar_prefetch = 0 : i64, scratch_operands = 0 : i64, tpu.core_type = #tpu.core_type<tc>, window_params = [{transform_indices = @transform_0, window_bounds = array<i64: 8, 8>}, {pipeline_mode = #tpu.pipeline_mode<synchronous>, transform_indices = @transform_1, window_bounds = array<i64: 8, 128>}, {pipeline_mode = #tpu.pipeline_mode<synchronous>, transform_indices = @transform_2, window_bounds = array<i64: 6, 128, 128>}, {pipeline_mode = #tpu.pipeline_mode<synchronous>, transform_indices = @transform_3, window_bounds = array<i64: 7, 1, 128>}, {transform_indices = @transform_4, window_bounds = array<i64: 8, 3>}]} {
    %c0 = arith.constant 0 : index
    %c0_0 = arith.constant 0 : index
    %0 = vector.load %arg1[%c0, %c0_0] : memref<8x8xf32, #tpu.memory_space<vmem>>, vector<8x8xf32>
    %1 = arith.truncf %0 : vector<8x8xf32> to vector<8x8xbf16>
    %c0_1 = arith.constant 0 : index
    %c0_2 = arith.constant 0 : index
    %2 = vector.load %arg2[%c0_1, %c0_2] : memref<8x128xbf16, #tpu.memory_space<vmem>>, vector<8x128xbf16>
    %cst = arith.constant dense<0.000000e+00> : vector<8x128xf32>
    %3 = tpu.matmul %1, %2, %cst {dimension_numbers = #tpu.dot_dimension_numbers<[1], [0], [0], [1], [0, 0, 1, 1], [], []>} : vector<8x8xbf16>, vector<8x128xbf16>, vector<8x128xf32> -> vector<8x128xf32>
    %c0_3 = arith.constant 0 : index
    %c0_4 = arith.constant 0 : index
    %c0_5 = arith.constant 0 : index
    %4 = vector.load %arg4[%c0_3, %c0_4, %c0_5] : memref<7x1x128xf32, #tpu.memory_space<vmem>>, vector<1x1x128xf32>
    %5 = vector.shape_cast %4 : vector<1x1x128xf32> to vector<1x128xf32>
    %6 = vector.broadcast %5 : vector<1x128xf32> to vector<8x128xf32>
    %7 = arith.addf %3, %6 : vector<8x128xf32>
    %cst_6 = arith.constant 2.000000e-01 : f32
    %8 = vector.broadcast %cst_6 : f32 to vector<8x128xf32>
    %9 = arith.mulf %8, %7 : vector<8x128xf32>
    %10 = arith.maximumf %7, %9 : vector<8x128xf32>
    %11 = arith.truncf %10 : vector<8x128xf32> to vector<8x128xbf16>
    %c0_7 = arith.constant 0 : index
    %c0_8 = arith.constant 0 : index
    %c0_9 = arith.constant 0 : index
    %12 = vector.load %arg3[%c0_7, %c0_8, %c0_9] : memref<6x128x128xbf16, #tpu.memory_space<vmem>>, vector<1x128x128xbf16>
    %13 = vector.shape_cast %12 : vector<1x128x128xbf16> to vector<128x128xbf16>
    %cst_10 = arith.constant dense<0.000000e+00> : vector<8x128xf32>
    %14 = tpu.matmul %11, %13, %cst_10 {dimension_numbers = #tpu.dot_dimension_numbers<[1], [0], [0], [1], [0, 0, 1, 1], [], []>} : vector<8x128xbf16>, vector<128x128xbf16>, vector<8x128xf32> -> vector<8x128xf32>
    %c1 = arith.constant 1 : index
    %c0_11 = arith.constant 0 : index
    %c0_12 = arith.constant 0 : index
    %15 = vector.load %arg4[%c1, %c0_11, %c0_12] : memref<7x1x128xf32, #tpu.memory_space<vmem>>, vector<1x1x128xf32>
    %16 = vector.shape_cast %15 : vector<1x1x128xf32> to vector<1x128xf32>
    %17 = vector.broadcast %16 : vector<1x128xf32> to vector<8x128xf32>
    %18 = arith.addf %14, %17 : vector<8x128xf32>
    %cst_13 = arith.constant 2.000000e-01 : f32
    %19 = vector.broadcast %cst_13 : f32 to vector<8x128xf32>
    %20 = arith.mulf %19, %18 : vector<8x128xf32>
    %21 = arith.maximumf %18, %20 : vector<8x128xf32>
    %22 = arith.truncf %21 : vector<8x128xf32> to vector<8x128xbf16>
    %c1_14 = arith.constant 1 : index
    %c0_15 = arith.constant 0 : index
    %c0_16 = arith.constant 0 : index
    %23 = vector.load %arg3[%c1_14, %c0_15, %c0_16] : memref<6x128x128xbf16, #tpu.memory_space<vmem>>, vector<1x128x128xbf16>
    %24 = vector.shape_cast %23 : vector<1x128x128xbf16> to vector<128x128xbf16>
    %cst_17 = arith.constant dense<0.000000e+00> : vector<8x128xf32>
    %25 = tpu.matmul %22, %24, %cst_17 {dimension_numbers = #tpu.dot_dimension_numbers<[1], [0], [0], [1], [0, 0, 1, 1], [], []>} : vector<8x128xbf16>, vector<128x128xbf16>, vector<8x128xf32> -> vector<8x128xf32>
    %c2 = arith.constant 2 : index
    %c0_18 = arith.constant 0 : index
    %c0_19 = arith.constant 0 : index
    %26 = vector.load %arg4[%c2, %c0_18, %c0_19] : memref<7x1x128xf32, #tpu.memory_space<vmem>>, vector<1x1x128xf32>
    %27 = vector.shape_cast %26 : vector<1x1x128xf32> to vector<1x128xf32>
    %28 = vector.broadcast %27 : vector<1x128xf32> to vector<8x128xf32>
    %29 = arith.addf %25, %28 : vector<8x128xf32>
    %cst_20 = arith.constant 2.000000e-01 : f32
    %30 = vector.broadcast %cst_20 : f32 to vector<8x128xf32>
    %31 = arith.mulf %30, %29 : vector<8x128xf32>
    %32 = arith.maximumf %29, %31 : vector<8x128xf32>
    %33 = arith.truncf %32 : vector<8x128xf32> to vector<8x128xbf16>
    %c2_21 = arith.constant 2 : index
    %c0_22 = arith.constant 0 : index
    %c0_23 = arith.constant 0 : index
    %34 = vector.load %arg3[%c2_21, %c0_22, %c0_23] : memref<6x128x128xbf16, #tpu.memory_space<vmem>>, vector<1x128x128xbf16>
    %35 = vector.shape_cast %34 : vector<1x128x128xbf16> to vector<128x128xbf16>
    %cst_24 = arith.constant dense<0.000000e+00> : vector<8x128xf32>
    %36 = tpu.matmul %33, %35, %cst_24 {dimension_numbers = #tpu.dot_dimension_numbers<[1], [0], [0], [1], [0, 0, 1, 1], [], []>} : vector<8x128xbf16>, vector<128x128xbf16>, vector<8x128xf32> -> vector<8x128xf32>
    %c3 = arith.constant 3 : index
    %c0_25 = arith.constant 0 : index
    %c0_26 = arith.constant 0 : index
    %37 = vector.load %arg4[%c3, %c0_25, %c0_26] : memref<7x1x128xf32, #tpu.memory_space<vmem>>, vector<1x1x128xf32>
    %38 = vector.shape_cast %37 : vector<1x1x128xf32> to vector<1x128xf32>
    %39 = vector.broadcast %38 : vector<1x128xf32> to vector<8x128xf32>
    %40 = arith.addf %36, %39 : vector<8x128xf32>
    %cst_27 = arith.constant 2.000000e-01 : f32
    %41 = vector.broadcast %cst_27 : f32 to vector<8x128xf32>
    %42 = arith.mulf %41, %40 : vector<8x128xf32>
    %43 = arith.maximumf %40, %42 : vector<8x128xf32>
    %44 = arith.truncf %43 : vector<8x128xf32> to vector<8x128xbf16>
    %c3_28 = arith.constant 3 : index
    %c0_29 = arith.constant 0 : index
    %c0_30 = arith.constant 0 : index
    %45 = vector.load %arg3[%c3_28, %c0_29, %c0_30] : memref<6x128x128xbf16, #tpu.memory_space<vmem>>, vector<1x128x128xbf16>
    %46 = vector.shape_cast %45 : vector<1x128x128xbf16> to vector<128x128xbf16>
    %cst_31 = arith.constant dense<0.000000e+00> : vector<8x128xf32>
    %47 = tpu.matmul %44, %46, %cst_31 {dimension_numbers = #tpu.dot_dimension_numbers<[1], [0], [0], [1], [0, 0, 1, 1], [], []>} : vector<8x128xbf16>, vector<128x128xbf16>, vector<8x128xf32> -> vector<8x128xf32>
    %c4 = arith.constant 4 : index
    %c0_32 = arith.constant 0 : index
    %c0_33 = arith.constant 0 : index
    %48 = vector.load %arg4[%c4, %c0_32, %c0_33] : memref<7x1x128xf32, #tpu.memory_space<vmem>>, vector<1x1x128xf32>
    %49 = vector.shape_cast %48 : vector<1x1x128xf32> to vector<1x128xf32>
    %50 = vector.broadcast %49 : vector<1x128xf32> to vector<8x128xf32>
    %51 = arith.addf %47, %50 : vector<8x128xf32>
    %cst_34 = arith.constant 2.000000e-01 : f32
    %52 = vector.broadcast %cst_34 : f32 to vector<8x128xf32>
    %53 = arith.mulf %52, %51 : vector<8x128xf32>
    %54 = arith.maximumf %51, %53 : vector<8x128xf32>
    %55 = arith.truncf %54 : vector<8x128xf32> to vector<8x128xbf16>
    %c4_35 = arith.constant 4 : index
    %c0_36 = arith.constant 0 : index
    %c0_37 = arith.constant 0 : index
    %56 = vector.load %arg3[%c4_35, %c0_36, %c0_37] : memref<6x128x128xbf16, #tpu.memory_space<vmem>>, vector<1x128x128xbf16>
    %57 = vector.shape_cast %56 : vector<1x128x128xbf16> to vector<128x128xbf16>
    %cst_38 = arith.constant dense<0.000000e+00> : vector<8x128xf32>
    %58 = tpu.matmul %55, %57, %cst_38 {dimension_numbers = #tpu.dot_dimension_numbers<[1], [0], [0], [1], [0, 0, 1, 1], [], []>} : vector<8x128xbf16>, vector<128x128xbf16>, vector<8x128xf32> -> vector<8x128xf32>
    %c5 = arith.constant 5 : index
    %c0_39 = arith.constant 0 : index
    %c0_40 = arith.constant 0 : index
    %59 = vector.load %arg4[%c5, %c0_39, %c0_40] : memref<7x1x128xf32, #tpu.memory_space<vmem>>, vector<1x1x128xf32>
    %60 = vector.shape_cast %59 : vector<1x1x128xf32> to vector<1x128xf32>
    %61 = vector.broadcast %60 : vector<1x128xf32> to vector<8x128xf32>
    %62 = arith.addf %58, %61 : vector<8x128xf32>
    %cst_41 = arith.constant 2.000000e-01 : f32
    %63 = vector.broadcast %cst_41 : f32 to vector<8x128xf32>
    %64 = arith.mulf %63, %62 : vector<8x128xf32>
    %65 = arith.maximumf %62, %64 : vector<8x128xf32>
    %66 = arith.truncf %65 : vector<8x128xf32> to vector<8x128xbf16>
    %c5_42 = arith.constant 5 : index
    %c0_43 = arith.constant 0 : index
    %c0_44 = arith.constant 0 : index
    %67 = vector.load %arg3[%c5_42, %c0_43, %c0_44] : memref<6x128x128xbf16, #tpu.memory_space<vmem>>, vector<1x128x128xbf16>
    %68 = vector.shape_cast %67 : vector<1x128x128xbf16> to vector<128x128xbf16>
    %cst_45 = arith.constant dense<0.000000e+00> : vector<8x128xf32>
    %69 = tpu.matmul %66, %68, %cst_45 {dimension_numbers = #tpu.dot_dimension_numbers<[1], [0], [0], [1], [0, 0, 1, 1], [], []>} : vector<8x128xbf16>, vector<128x128xbf16>, vector<8x128xf32> -> vector<8x128xf32>
    %c6 = arith.constant 6 : index
    %c0_46 = arith.constant 0 : index
    %c0_47 = arith.constant 0 : index
    %70 = vector.load %arg4[%c6, %c0_46, %c0_47] : memref<7x1x128xf32, #tpu.memory_space<vmem>>, vector<1x1x128xf32>
    %71 = vector.shape_cast %70 : vector<1x1x128xf32> to vector<1x128xf32>
    %72 = vector.broadcast %71 : vector<1x128xf32> to vector<8x128xf32>
    %73 = arith.addf %69, %72 : vector<8x128xf32>
    %74 = vector.extract_strided_slice %73 {offsets = [0, 0], sizes = [8, 3], strides = [1, 1]} : vector<8x128xf32> to vector<8x3xf32>
    %c0_48 = arith.constant 0 : index
    %c0_49 = arith.constant 0 : index
    %75 = vector.load %arg5[%c0_48, %c0_49] : memref<8x3xf32, #tpu.memory_space<vmem>>, vector<8x3xf32>
    tpu.vector_store %arg5[%c0_48, %c0_49], %74 {strides = array<i32>} : memref<8x3xf32, #tpu.memory_space<vmem>>, vector<8x3xf32>,
    return
  }
  func.func @transform_0(%arg0: i32) -> (i32, i32) {
    %c0_i32 = arith.constant 0 : i32
    %c0_i32_0 = arith.constant 0 : i32
    return %arg0, %c0_i32 : i32, i32
  }
  func.func @transform_1(%arg0: i32) -> (i32, i32) {
    %c0_i32 = arith.constant 0 : i32
    %c0_i32_0 = arith.constant 0 : i32
    %c0_i32_1 = arith.constant 0 : i32
    return %c0_i32, %c0_i32_0 : i32, i32
  }
  func.func @transform_2(%arg0: i32) -> (i32, i32, i32) {
    %c0_i32 = arith.constant 0 : i32
    %c0_i32_0 = arith.constant 0 : i32
    %c0_i32_1 = arith.constant 0 : i32
    %c0_i32_2 = arith.constant 0 : i32
    return %c0_i32, %c0_i32_0, %c0_i32_1 : i32, i32, i32
  }
  func.func @transform_3(%arg0: i32) -> (i32, i32, i32) {
    %c0_i32 = arith.constant 0 : i32
    %c0_i32_0 = arith.constant 0 : i32
    %c0_i32_1 = arith.constant 0 : i32
    %c0_i32_2 = arith.constant 0 : i32
    return %c0_i32, %c0_i32_0, %c0_i32_1 : i32, i32, i32
  }
  func.func @transform_4(%arg0: i32) -> (i32, i32) {
    %c0_i32 = arith.constant 0 : i32
    %c0_i32_0 = arith.constant 0 : i32
    return %arg0, %c0_i32 : i32, i32
  }
}

</mosaic_0001>

<llo_original>
// kernel: tpu_custom_call.1
$region0: #{tpu_custom_call.1}
  #allocation0 [shape = 'u32[]', space=smem, size = 0x4, offset = 0x4, fixed_abs, tag = 'smem constant byte address 0x4 - core index']
  #allocation1 [shape = 'u32[144,128]{1,0:T(1,128)}', space=vmem, size = 0x12000, scoped, tag = 'internal scratch']
  %s0 = inlined_call_operand.vmem [shape: f32[16,8], index: 0, kind: input, shape index: {}]
  %s1 = inlined_call_operand.vmem [shape: bf16[8,128], index: 1, kind: input, shape index: {}]
  %s2 = inlined_call_operand.hbm [shape: bf16[6,128,128], index: 2, kind: input, shape index: {}]
  %s3 = inlined_call_operand.vmem [shape: f32[7,1,128], index: 3, kind: input, shape index: {}]
  %s4 = inlined_call_operand.vmem [shape: f32[16,3], index: 4, kind: output, shape index: {}]
  %s5 = sld [smem:[#allocation0]]
  $region53: #{tpu_custom_call.1} parent=0
    _
  %s7 = ssub.s32 1, %s5
  %s8 = scalar_select 0, %s7, %s5
  $region1: #{tpu_custom_call.1} parent=0
    #allocation2 [shape = 'u8[196608]{0}', space=vmem, size = 0x30000, scoped, tag = 'input window, operand 2, single buffered']
    #allocation3 [shape = 's32[2]{0}', space=sflag, size = 0x8, scoped, tag = 'scoped memory for tpu_custom_call.1']
    %9 = vsyncpa [#allocation3], 0
    loop: start=0, step=1, limit=4
    $region2: #{tpu_custom_call.1} parent=1 // loop_pre_header
      _
    $region3: #{tpu_custom_call.1} parent=1 // loop_header
      %s11 = sphi 0, %s15
      %p12 = scmp.ge.s32.totalorder %s11, 4
      %s21 = sphi 0, %s23
      %s24 = sphi 0, %s21
      %s25 = sphi 0, %s24
      %s41 = sphi 0, %s25
      %s45 = sphi 0, %s45
      %s47 = sphi 0, %s45
      %s48 = sphi 0, %s47
      %s62 = sphi 0, %s48
      %s66 = sphi 0, %s66
      %s68 = sphi 0, %s66
      %s69 = sphi 0, %s68
      %s83 = sphi 0, %s69
      %s87 = sphi 0, %s87
      %s89 = sphi 0, %s87
      %s90 = sphi 0, %s89
      %s104 = sphi 0, %s90
      %s110 = sphi 0, %s112
      %s113 = sphi 0, %s110
      %s114 = sphi 0, %s113
      %s130 = sphi 0, %s114
    $region4: #{tpu_custom_call.1} parent=1 // loop_header_branch
      %14 = sbr.rel (%p12) target = $region8
    $region5: #{tpu_custom_call.1} parent=1 // loop_body
      %s16 = ssub.s32 %s11, 1
      %s17 = ssub.s32 %s11, 2
      %s18 = sadd.s32 %s11, 1
      %s19 = ssub.s32 %s11, %s18
      %p20 = scmp.eq.s32.totalorder %s19, 0
      %s22 = sadd.s32 %s21, 1
      %s23 = scalar_select %p20, %s21, %s22
      %p26 = pneg %p20
      %p27 = scmp.eq.s32.totalorder %s11, 1
      %p28 = por %p26, %p27
      %p29 = scmp.ne.s32.totalorder %s21, %s24
      %p30 = scmp.eq.s32.totalorder %s11, 0
      %p31 = por %p29, %p30
      %p32 = scmp.ne.s32.totalorder %s21, %s24
      %p33 = scmp.eq.s32.totalorder %s16, 1
      %p34 = por %p32, %p33
      %p35 = scmp.ne.s32.totalorder %s24, %s25
      %p36 = scmp.eq.s32.totalorder %s16, 0
      %p37 = por %p35, %p36
      %p38 = scmp.ne.s32.totalorder %s24, %s25
      %p39 = scmp.eq.s32.totalorder %s17, 1
      %p40 = por %p38, %p39
      %p42 = scmp.ne.s32.totalorder %s25, %s41
      %p43 = scmp.eq.s32.totalorder %s17, 0
      %p44 = por %p42, %p43
      %s46 = sadd.s32 %s45, 1
      %p49 = scmp.eq.s32.totalorder %s11, 1
      %p50 = scmp.ne.s32.totalorder %s45, %s47
      %p51 = scmp.eq.s32.totalorder %s11, 0
      %p52 = por %p50, %p51
      %p53 = scmp.ne.s32.totalorder %s45, %s47
      %p54 = scmp.eq.s32.totalorder %s16, 1
      %p55 = por %p53, %p54
      %p56 = scmp.ne.s32.totalorder %s47, %s48
      %p57 = scmp.eq.s32.totalorder %s16, 0
      %p58 = por %p56, %p57
      %p59 = scmp.ne.s32.totalorder %s47, %s48
      %p60 = scmp.eq.s32.totalorder %s17, 1
      %p61 = por %p59, %p60
      %p63 = scmp.ne.s32.totalorder %s48, %s62
      %p64 = scmp.eq.s32.totalorder %s17, 0
      %p65 = por %p63, %p64
      %s67 = sadd.s32 %s66, 1
      %p70 = scmp.eq.s32.totalorder %s11, 1
      %p71 = scmp.ne.s32.totalorder %s66, %s68
      %p72 = scmp.eq.s32.totalorder %s11, 0
      %p73 = por %p71, %p72
      %p74 = scmp.ne.s32.totalorder %s66, %s68
      %p75 = scmp.eq.s32.totalorder %s16, 1
      %p76 = por %p74, %p75
      %p77 = scmp.ne.s32.totalorder %s68, %s69
      %p78 = scmp.eq.s32.totalorder %s16, 0
      %p79 = por %p77, %p78
      %p80 = scmp.ne.s32.totalorder %s68, %s69
      %p81 = scmp.eq.s32.totalorder %s17, 1
      %p82 = por %p80, %p81
      %p84 = scmp.ne.s32.totalorder %s69, %s83
      %p85 = scmp.eq.s32.totalorder %s17, 0
      %p86 = por %p84, %p85
      %s88 = sadd.s32 %s87, 1
      %p91 = scmp.eq.s32.totalorder %s11, 1
      %p92 = scmp.ne.s32.totalorder %s87, %s89
      %p93 = scmp.eq.s32.totalorder %s11, 0
      %p94 = por %p92, %p93
      %p95 = scmp.ne.s32.totalorder %s87, %s89
      %p96 = scmp.eq.s32.totalorder %s16, 1
      %p97 = por %p95, %p96
      %p98 = scmp.ne.s32.totalorder %s89, %s90
      %p99 = scmp.eq.s32.totalorder %s16, 0
      %p100 = por %p98, %p99
      %p101 = scmp.ne.s32.totalorder %s89, %s90
      %p102 = scmp.eq.s32.totalorder %s17, 1
      %p103 = por %p101, %p102
      %p105 = scmp.ne.s32.totalorder %s90, %s104
      %p106 = scmp.eq.s32.totalorder %s17, 0
      %p107 = por %p105, %p106
      %s108 = ssub.s32 %s11, %s18
      %p109 = scmp.eq.s32.totalorder %s108, 0
      %s111 = sadd.s32 %s110, 1
      %s112 = scalar_select %p109, %s110, %s111
      %p115 = pneg %p109
      %p116 = scmp.eq.s32.totalorder %s11, 1
      %p117 = por %p115, %p116
      %p118 = scmp.ne.s32.totalorder %s110, %s113
      %p119 = scmp.eq.s32.totalorder %s11, 0
      %p120 = por %p118, %p119
      %p121 = scmp.ne.s32.totalorder %s110, %s113
      %p122 = scmp.eq.s32.totalorder %s16, 1
      %p123 = por %p121, %p122
      %p124 = scmp.ne.s32.totalorder %s113, %s114
      %p125 = scmp.eq.s32.totalorder %s16, 0
      %p126 = por %p124, %p125
      %p127 = scmp.ne.s32.totalorder %s113, %s114
      %p128 = scmp.eq.s32.totalorder %s17, 1
      %p129 = por %p127, %p128
      %p131 = scmp.ne.s32.totalorder %s114, %s130
      %p132 = scmp.eq.s32.totalorder %s17, 0
      %p133 = por %p131, %p132
      %p134 = scmp.le.s32.totalorder 1, %s11
      %p135 = scmp.lt.s32.totalorder %s11, 3
      %p136 = pnand %p134, %p135
      %p137 = pneg %p136
      // Predicated region
      $region9: #{tpu_custom_call.1} parent=5 // pred_check
        _
      $region10: #{tpu_custom_call.1} parent=5 // pred_check_branch
        %139 = sbr.rel (%p136) target = $region12
      $region11: #{tpu_custom_call.1} parent=5 // pred_region
        %s140 = ssub.s32 %s11, 1
        // Predicated region
        $region13: #{tpu_custom_call.1} parent=11 // pred_check
          %p141 = pneg %p58
        $region14: #{tpu_custom_call.1} parent=11 // pred_check_branch
          %143 = sbr.rel (%p141) target = $region16
        $region15: #{tpu_custom_call.1} parent=11 // pred_region
          _
        $region16: #{tpu_custom_call.1} parent=11 // pred_fallthru
          _
        // Predicated region
        $region17: #{tpu_custom_call.1} parent=11 // pred_check
          %p144 = pneg %p79
        $region18: #{tpu_custom_call.1} parent=11 // pred_check_branch
          %146 = sbr.rel (%p144) target = $region20
        $region19: #{tpu_custom_call.1} parent=11 // pred_region
          %s148 = ssub.s32 6144, 6144
          %149 = vsyncadd [#allocation3], %s148
          %s150 = sshll.u32 [#allocation2], 4
          %s151 = int_to_ptr.vmem [resolvable:$true] %s150
          %156 = dma.hbm_to_vmem [thread:$0]  %s2, 6144, %s151, [#allocation3], 64, 64, 4
        $region20: #{tpu_custom_call.1} parent=11 // pred_fallthru
          _
        // Predicated region
        $region21: #{tpu_custom_call.1} parent=11 // pred_check
          %p157 = pneg %p100
        $region22: #{tpu_custom_call.1} parent=11 // pred_check_branch
          %159 = sbr.rel (%p157) target = $region24
        $region23: #{tpu_custom_call.1} parent=11 // pred_region
          _
        $region24: #{tpu_custom_call.1} parent=11 // pred_fallthru
          _
      $region12: #{tpu_custom_call.1} parent=5 // pred_fallthru
        _
      %p160 = scmp.lt.s32.totalorder %s11, 2
      // Predicated region
      $region25: #{tpu_custom_call.1} parent=5 // pred_check
        %p161 = pneg %p160
      $region26: #{tpu_custom_call.1} parent=5 // pred_check_branch
        %163 = sbr.rel (%p161) target = $region28
      $region27: #{tpu_custom_call.1} parent=5 // pred_region
        // Predicated region
        $region29: #{tpu_custom_call.1} parent=27 // pred_check
          %p164 = pneg %p31
        $region30: #{tpu_custom_call.1} parent=27 // pred_check_branch
          %166 = sbr.rel (%p164) target = $region32
        $region31: #{tpu_custom_call.1} parent=27 // pred_region
          %p167 = scmp.lt.s32.totalorder %s11, 1
          %s168 = scalar_select %p167, %s11, 1
          %s169 = smul.addr %s168, 8
          %s170 = scalar_lea.vmem %s0, %s169
        $region32: #{tpu_custom_call.1} parent=27 // pred_fallthru
          _
      $region28: #{tpu_custom_call.1} parent=5 // pred_fallthru
        _
      %p171 = scmp.le.s32.totalorder 1, %s11
      %p172 = scmp.lt.s32.totalorder %s11, 3
      %p173 = pnand %p171, %p172
      %p174 = pneg %p173
      // Predicated region
      $region33: #{tpu_custom_call.1} parent=5 // pred_check
        _
      $region34: #{tpu_custom_call.1} parent=5 // pred_check_branch
        %176 = sbr.rel (%p173) target = $region36
      $region35: #{tpu_custom_call.1} parent=5 // pred_region
        %s177 = ssub.s32 %s11, 1
        // Predicated region
        $region37: #{tpu_custom_call.1} parent=35 // pred_check
          %p178 = pneg %p79
        $region38: #{tpu_custom_call.1} parent=35 // pred_check_branch
          %180 = sbr.rel (%p178) target = $region40
        $region39: #{tpu_custom_call.1} parent=35 // pred_region
          %181 = dma.done [#allocation3], 6144
        $region40: #{tpu_custom_call.1} parent=35 // pred_fallthru
          _
        %p182 = scmp.lt.s32.totalorder %s16, 1
        %s183 = scalar_select %p182, %s16, 1
        %s184 = smul.addr %s183, 8
        %s185 = scalar_lea.vmem %s0, %s184
        %p186 = pneg %p37
        %p187 = pneg %p34
        %p188 = pneg %p58
        %p189 = pneg %p55
        %p190 = pneg %p79
        %p191 = pneg %p76
        %p192 = pneg %p100
        %p193 = pneg %p97
        %p194 = pneg %p126
        %p195 = pneg %p123
        %p196 = scmp.lt.s32.totalorder %s16, 1
        %s197 = scalar_select %p196, %s16, 1
        %s198 = smul.addr %s197, 8
        %s199 = scalar_lea.vmem %s4, %s198
        %p200 = scmp.lt.s32.totalorder %s16, 1
        %s201 = scalar_select %p200, %s16, 1
        %s202 = smul.addr %s201, 8
        %s203 = scalar_lea.vmem %s0, %s202
        %p204 = scmp.lt.s32.totalorder %s16, 1
        %s205 = scalar_select %p204, %s16, 1
        %s206 = smul.addr %s205, 8
        %s207 = scalar_lea.vmem %s4, %s206
        %v209 = vld [vmem:[%s203] sm:$0xff]
        %v210 = vpack.c.bf16 %v209, %v209
        %v211 = vld [vmem:[%s1] sm:$0xf]
        %v212 = vld [vmem:[%s3] sm:$0x1]
        %v214 = vlaneseq
        %v215 = vshrl.u32 %v214, 7
        %v216 = vsub.s32 0, %v215
        %v217 = vrot.slane %v212, %v216
        %vm219 = vcmask 64512
        %v221 = vsel %vm219, %v210, 0
        %vm223 = vcmask 1043456
        %v225 = vsel %vm223, %v211, 0
        %227 = vmatprep.subr.bf16.mxu0 0
        %228 = vmatpush1.bf16.msra.mxu0 %v225
        %229 = vmatprep.subr.bf16.mxu0 0
        %230 = vmatpush1.bf16.msra.mxu0 0
        %231 = vmatprep.subr.bf16.mxu0 0
        %232 = vmatpush1.bf16.msra.mxu0 0
        %233 = vmatprep.subr.bf16.mxu0 0
        %234 = vmatpush1.bf16.msra.mxu0 0
        %235 = vmatprep.subr.bf16.mxu0 0
        %236 = vmatpush1.bf16.msra.mxu0 0
        %237 = vmatprep.subr.bf16.mxu0 0
        %238 = vmatpush1.bf16.msra.mxu0 0
        %239 = vmatprep.subr.bf16.mxu0 0
        %240 = vmatpush1.bf16.msra.mxu0 0
        %241 = vmatprep.subr.bf16.mxu0 0
        %242 = vmatpush1.bf16.msra.mxu0 0
        %243 = vmatprep.subr.bf16.mxu0 0
        %244 = vmatpush1.bf16.msra.mxu0 0
        %245 = vmatprep.subr.bf16.mxu0 0
        %246 = vmatpush1.bf16.msra.mxu0 0
        %247 = vmatprep.subr.bf16.mxu0 0
        %248 = vmatpush1.bf16.msra.mxu0 0
        %249 = vmatprep.subr.bf16.mxu0 0
        %250 = vmatpush1.bf16.msra.mxu0 0
        %251 = vmatprep.subr.bf16.mxu0 0
        %252 = vmatpush1.bf16.msra.mxu0 0
        %253 = vmatprep.subr.bf16.mxu0 0
        %254 = vmatpush1.bf16.msra.mxu0 0
        %255 = vmatprep.subr.bf16.mxu0 0
        %256 = vmatpush1.bf16.msra.mxu0 0
        %257 = vmatprep.subr.bf16.mxu0 0
        %258 = vmatpush1.bf16.msra.mxu0 0
        %259 = vmatprep.mubr.bf16.mxu0 0
        %260 = vmatmul.mubr.bf16.gmra.mrb[0].mxu0 %v221
        %v261 = vpop.f32.mrb[0].mxu0
        %v262 = vadd.f32 %v217, %v261
        %v263 = vpop.f32.mrb[0].mxu0
        %v264 = vpop.f32.mrb[0].mxu0
        %v265 = vpop.f32.mrb[0].mxu0
        %266 = vdwg.mxu0
        %v267 = vmul.f32 %v262, 0.2
        %v268 = vmax.f32 %v262, %v267
        %v269 = vpack.c.bf16 %v268, %v268
        %v270 = vld [vmem:[#allocation2] sm:$0xf]
        %v271 = vld [vmem:[#allocation2 + $0x4] sm:$0xf]
        %v272 = vld [vmem:[#allocation2 + $0x8] sm:$0xf]
        %v273 = vld [vmem:[#allocation2 + $0xc] sm:$0xf]
        %v274 = vld [vmem:[#allocation2 + $0x10] sm:$0xf]
        %v275 = vld [vmem:[#allocation2 + $0x14] sm:$0xf]
        %v276 = vld [vmem:[#allocation2 + $0x18] sm:$0xf]
        %v277 = vld [vmem:[#allocation2 + $0x1c] sm:$0xf]
        %v278 = vld [vmem:[#allocation2 + $0x20] sm:$0xf]
        %v279 = vld [vmem:[#allocation2 + $0x24] sm:$0xf]
        %v280 = vld [vmem:[#allocation2 + $0x28] sm:$0xf]
        %v281 = vld [vmem:[#allocation2 + $0x2c] sm:$0xf]
        %v282 = vld [vmem:[#allocation2 + $0x30] sm:$0xf]
        %v283 = vld [vmem:[#allocation2 + $0x34] sm:$0xf]
        %v284 = vld [vmem:[#allocation2 + $0x38] sm:$0xf]
        %v285 = vld [vmem:[#allocation2 + $0x3c] sm:$0xf]
        %s286 = scalar_lea.vmem %s3, 1
        %v287 = vld [vmem:[%s286] sm:$0x1]
        %v289 = vlaneseq
        %v290 = vshrl.u32 %v289, 7
        %v291 = vsub.s32 0, %v290
        %v292 = vrot.slane %v287, %v291
        %v310 = vunpack.c.l.b16 %v270
        %v311 = vunpack.c.l.b16 %v271
        %v312 = vunpack.c.l.b16 %v272
        %v313 = vunpack.c.l.b16 %v273
        %v314 = vunpack.c.l.b16 %v274
        %v315 = vunpack.c.l.b16 %v275
        %v316 = vunpack.c.l.b16 %v276
        %v317 = vunpack.c.l.b16 %v277
        %v318 = vunpack.c.l.b16 %v278
        %v319 = vunpack.c.l.b16 %v279
        %v320 = vunpack.c.l.b16 %v280
        %v321 = vunpack.c.l.b16 %v281
        %v322 = vunpack.c.l.b16 %v282
        %v323 = vunpack.c.l.b16 %v283
        %v324 = vunpack.c.l.b16 %v284
        %v325 = vunpack.c.l.b16 %v285
        %v326 = vpack.c.b16 %v311, %v310
        %v327 = vpack.c.b16 %v313, %v312
        %v328 = vpack.c.b16 %v315, %v314
        %v329 = vpack.c.b16 %v317, %v316
        %v330 = vpack.c.b16 %v319, %v318
        %v331 = vpack.c.b16 %v321, %v320
        %v332 = vpack.c.b16 %v323, %v322
        %v333 = vpack.c.b16 %v325, %v324
        %342 = vmatprep.subr.bf16.mxu0 0
        %343 = vmatpush1.bf16.msra.mxu0 %v326
        %344 = vmatprep.subr.bf16.mxu0 0
        %345 = vmatpush1.bf16.msra.mxu0 %v327
        %346 = vmatprep.subr.bf16.mxu0 0
        %347 = vmatpush1.bf16.msra.mxu0 %v328
        %348 = vmatprep.subr.bf16.mxu0 0
        %349 = vmatpush1.bf16.msra.mxu0 %v329
        %350 = vmatprep.subr.bf16.mxu0 0
        %351 = vmatpush1.bf16.msra.mxu0 %v330
        %352 = vmatprep.subr.bf16.mxu0 0
        %353 = vmatpush1.bf16.msra.mxu0 %v331
        %354 = vmatprep.subr.bf16.mxu0 0
        %355 = vmatpush1.bf16.msra.mxu0 %v332
        %356 = vmatprep.subr.bf16.mxu0 0
        %357 = vmatpush1.bf16.msra.mxu0 %v333
        %358 = vmatprep.subr.bf16.mxu0 0
        %359 = vmatpush1.bf16.msra.mxu0 0
        %360 = vmatprep.subr.bf16.mxu0 0
        %361 = vmatpush1.bf16.msra.mxu0 0
        %362 = vmatprep.subr.bf16.mxu0 0
        %363 = vmatpush1.bf16.msra.mxu0 0
        %364 = vmatprep.subr.bf16.mxu0 0
        %365 = vmatpush1.bf16.msra.mxu0 0
        %366 = vmatprep.subr.bf16.mxu0 0
        %367 = vmatpush1.bf16.msra.mxu0 0
        %368 = vmatprep.subr.bf16.mxu0 0
        %369 = vmatpush1.bf16.msra.mxu0 0
        %370 = vmatprep.subr.bf16.mxu0 0
        %371 = vmatpush1.bf16.msra.mxu0 0
        %372 = vmatprep.subr.bf16.mxu0 0
        %373 = vmatpush1.bf16.msra.mxu0 0
        %374 = vmatprep.mubr.bf16.mxu0 0
        %375 = vmatmul.mubr.bf16.gmra.mrb[0].mxu0 %v269
        %v376 = vpop.f32.mrb[0].mxu0
        %v377 = vadd.f32 %v292, %v376
        %v378 = vpop.f32.mrb[0].mxu0
        %v379 = vpop.f32.mrb[0].mxu0
        %v380 = vpop.f32.mrb[0].mxu0
        %381 = vdwg.mxu0
        %v382 = vmul.f32 %v377, 0.2
        %v383 = vmax.f32 %v377, %v382
        %v384 = vpack.c.bf16 %v383, %v383
        %s385 = scalar_lea.vmem [#allocation2], 64
        %v386 = vld [vmem:[%s385] sm:$0xf]
        %v387 = vld [vmem:[%s385 + $0x4] sm:$0xf]
        %v388 = vld [vmem:[%s385 + $0x8] sm:$0xf]
        %v389 = vld [vmem:[%s385 + $0xc] sm:$0xf]
        %v390 = vld [vmem:[%s385 + $0x10] sm:$0xf]
        %v391 = vld [vmem:[%s385 + $0x14] sm:$0xf]
        %v392 = vld [vmem:[%s385 + $0x18] sm:$0xf]
        %v393 = vld [vmem:[%s385 + $0x1c] sm:$0xf]
        %v394 = vld [vmem:[%s385 + $0x20] sm:$0xf]
        %v395 = vld [vmem:[%s385 + $0x24] sm:$0xf]
        %v396 = vld [vmem:[%s385 + $0x28] sm:$0xf]
        %v397 = vld [vmem:[%s385 + $0x2c] sm:$0xf]
        %v398 = vld [vmem:[%s385 + $0x30] sm:$0xf]
        %v399 = vld [vmem:[%s385 + $0x34] sm:$0xf]
        %v400 = vld [vmem:[%s385 + $0x38] sm:$0xf]
        %v401 = vld [vmem:[%s385 + $0x3c] sm:$0xf]
        %s402 = scalar_lea.vmem %s3, 2
        %v403 = vld [vmem:[%s402] sm:$0x1]
        %v405 = vlaneseq
        %v406 = vshrl.u32 %v405, 7
        %v407 = vsub.s32 0, %v406
        %v408 = vrot.slane %v403, %v407
        %v426 = vunpack.c.l.b16 %v386
        %v427 = vunpack.c.l.b16 %v387
        %v428 = vunpack.c.l.b16 %v388
        %v429 = vunpack.c.l.b16 %v389
        %v430 = vunpack.c.l.b16 %v390
        %v431 = vunpack.c.l.b16 %v391
        %v432 = vunpack.c.l.b16 %v392
        %v433 = vunpack.c.l.b16 %v393
        %v434 = vunpack.c.l.b16 %v394
        %v435 = vunpack.c.l.b16 %v395
        %v436 = vunpack.c.l.b16 %v396
        %v437 = vunpack.c.l.b16 %v397
        %v438 = vunpack.c.l.b16 %v398
        %v439 = vunpack.c.l.b16 %v399
        %v440 = vunpack.c.l.b16 %v400
        %v441 = vunpack.c.l.b16 %v401
        %v442 = vpack.c.b16 %v427, %v426
        %v443 = vpack.c.b16 %v429, %v428
        %v444 = vpack.c.b16 %v431, %v430
        %v445 = vpack.c.b16 %v433, %v432
        %v446 = vpack.c.b16 %v435, %v434
        %v447 = vpack.c.b16 %v437, %v436
        %v448 = vpack.c.b16 %v439, %v438
        %v449 = vpack.c.b16 %v441, %v440
        %458 = vmatprep.subr.bf16.mxu0 0
        %459 = vmatpush1.bf16.msra.mxu0 %v442
        %460 = vmatprep.subr.bf16.mxu0 0
        %461 = vmatpush1.bf16.msra.mxu0 %v443
        %462 = vmatprep.subr.bf16.mxu0 0
        %463 = vmatpush1.bf16.msra.mxu0 %v444
        %464 = vmatprep.subr.bf16.mxu0 0
        %465 = vmatpush1.bf16.msra.mxu0 %v445
        %466 = vmatprep.subr.bf16.mxu0 0
        %467 = vmatpush1.bf16.msra.mxu0 %v446
        %468 = vmatprep.subr.bf16.mxu0 0
        %469 = vmatpush1.bf16.msra.mxu0 %v447
        %470 = vmatprep.subr.bf16.mxu0 0
        %471 = vmatpush1.bf16.msra.mxu0 %v448
        %472 = vmatprep.subr.bf16.mxu0 0
        %473 = vmatpush1.bf16.msra.mxu0 %v449
        %474 = vmatprep.subr.bf16.mxu0 0
        %475 = vmatpush1.bf16.msra.mxu0 0
        %476 = vmatprep.subr.bf16.mxu0 0
        %477 = vmatpush1.bf16.msra.mxu0 0
        %478 = vmatprep.subr.bf16.mxu0 0
        %479 = vmatpush1.bf16.msra.mxu0 0
        %480 = vmatprep.subr.bf16.mxu0 0
        %481 = vmatpush1.bf16.msra.mxu0 0
        %482 = vmatprep.subr.bf16.mxu0 0
        %483 = vmatpush1.bf16.msra.mxu0 0
        %484 = vmatprep.subr.bf16.mxu0 0
        %485 = vmatpush1.bf16.msra.mxu0 0
        %486 = vmatprep.subr.bf16.mxu0 0
        %487 = vmatpush1.bf16.msra.mxu0 0
        %488 = vmatprep.subr.bf16.mxu0 0
        %489 = vmatpush1.bf16.msra.mxu0 0
        %490 = vmatprep.mubr.bf16.mxu0 0
        %491 = vmatmul.mubr.bf16.gmra.mrb[0].mxu0 %v384
        %v492 = vpop.f32.mrb[0].mxu0
        %v493 = vadd.f32 %v408, %v492
        %v494 = vpop.f32.mrb[0].mxu0
        %v495 = vpop.f32.mrb[0].mxu0
        %v496 = vpop.f32.mrb[0].mxu0
        %497 = vdwg.mxu0
        %v498 = vmul.f32 %v493, 0.2
        %v499 = vmax.f32 %v493, %v498
        %v500 = vpack.c.bf16 %v499, %v499
        %s501 = scalar_lea.vmem [#allocation2], 128
        %v502 = vld [vmem:[%s501] sm:$0xf]
        %v503 = vld [vmem:[%s501 + $0x4] sm:$0xf]
        %v504 = vld [vmem:[%s501 + $0x8] sm:$0xf]
        %v505 = vld [vmem:[%s501 + $0xc] sm:$0xf]
        %v506 = vld [vmem:[%s501 + $0x10] sm:$0xf]
        %v507 = vld [vmem:[%s501 + $0x14] sm:$0xf]
        %v508 = vld [vmem:[%s501 + $0x18] sm:$0xf]
        %v509 = vld [vmem:[%s501 + $0x1c] sm:$0xf]
        %v510 = vld [vmem:[%s501 + $0x20] sm:$0xf]
        %v511 = vld [vmem:[%s501 + $0x24] sm:$0xf]
        %v512 = vld [vmem:[%s501 + $0x28] sm:$0xf]
        %v513 = vld [vmem:[%s501 + $0x2c] sm:$0xf]
        %v514 = vld [vmem:[%s501 + $0x30] sm:$0xf]
        %v515 = vld [vmem:[%s501 + $0x34] sm:$0xf]
        %v516 = vld [vmem:[%s501 + $0x38] sm:$0xf]
        %v517 = vld [vmem:[%s501 + $0x3c] sm:$0xf]
        %s518 = scalar_lea.vmem %s3, 3
        %v519 = vld [vmem:[%s518] sm:$0x1]
        %v521 = vlaneseq
        %v522 = vshrl.u32 %v521, 7
        %v523 = vsub.s32 0, %v522
        %v524 = vrot.slane %v519, %v523
        %v542 = vunpack.c.l.b16 %v502
        %v543 = vunpack.c.l.b16 %v503
        %v544 = vunpack.c.l.b16 %v504
        %v545 = vunpack.c.l.b16 %v505
        %v546 = vunpack.c.l.b16 %v506
        %v547 = vunpack.c.l.b16 %v507
        %v548 = vunpack.c.l.b16 %v508
        %v549 = vunpack.c.l.b16 %v509
        %v550 = vunpack.c.l.b16 %v510
        %v551 = vunpack.c.l.b16 %v511
        %v552 = vunpack.c.l.b16 %v512
        %v553 = vunpack.c.l.b16 %v513
        %v554 = vunpack.c.l.b16 %v514
        %v555 = vunpack.c.l.b16 %v515
        %v556 = vunpack.c.l.b16 %v516
        %v557 = vunpack.c.l.b16 %v517
        %v558 = vpack.c.b16 %v543, %v542
        %v559 = vpack.c.b16 %v545, %v544
        %v560 = vpack.c.b16 %v547, %v546
        %v561 = vpack.c.b16 %v549, %v548
        %v562 = vpack.c.b16 %v551, %v550
        %v563 = vpack.c.b16 %v553, %v552
        %v564 = vpack.c.b16 %v555, %v554
        %v565 = vpack.c.b16 %v557, %v556
        %574 = vmatprep.subr.bf16.mxu0 0
        %575 = vmatpush1.bf16.msra.mxu0 %v558
        %576 = vmatprep.subr.bf16.mxu0 0
        %577 = vmatpush1.bf16.msra.mxu0 %v559
        %578 = vmatprep.subr.bf16.mxu0 0
        %579 = vmatpush1.bf16.msra.mxu0 %v560
        %580 = vmatprep.subr.bf16.mxu0 0
        %581 = vmatpush1.bf16.msra.mxu0 %v561
        %582 = vmatprep.subr.bf16.mxu0 0
        %583 = vmatpush1.bf16.msra.mxu0 %v562
        %584 = vmatprep.subr.bf16.mxu0 0
        %585 = vmatpush1.bf16.msra.mxu0 %v563
        %586 = vmatprep.subr.bf16.mxu0 0
        %587 = vmatpush1.bf16.msra.mxu0 %v564
        %588 = vmatprep.subr.bf16.mxu0 0
        %589 = vmatpush1.bf16.msra.mxu0 %v565
        %590 = vmatprep.subr.bf16.mxu0 0
        %591 = vmatpush1.bf16.msra.mxu0 0
        %592 = vmatprep.subr.bf16.mxu0 0
        %593 = vmatpush1.bf16.msra.mxu0 0
        %594 = vmatprep.subr.bf16.mxu0 0
        %595 = vmatpush1.bf16.msra.mxu0 0
        %596 = vmatprep.subr.bf16.mxu0 0
        %597 = vmatpush1.bf16.msra.mxu0 0
        %598 = vmatprep.subr.bf16.mxu0 0
        %599 = vmatpush1.bf16.msra.mxu0 0
        %600 = vmatprep.subr.bf16.mxu0 0
        %601 = vmatpush1.bf16.msra.mxu0 0
        %602 = vmatprep.subr.bf16.mxu0 0
        %603 = vmatpush1.bf16.msra.mxu0 0
        %604 = vmatprep.subr.bf16.mxu0 0
        %605 = vmatpush1.bf16.msra.mxu0 0
        %606 = vmatprep.mubr.bf16.mxu0 0
        %607 = vmatmul.mubr.bf16.gmra.mrb[0].mxu0 %v500
        %v608 = vpop.f32.mrb[0].mxu0
        %v609 = vadd.f32 %v524, %v608
        %v610 = vpop.f32.mrb[0].mxu0
        %v611 = vpop.f32.mrb[0].mxu0
        %v612 = vpop.f32.mrb[0].mxu0
        %613 = vdwg.mxu0
        %v614 = vmul.f32 %v609, 0.2
        %v615 = vmax.f32 %v609, %v614
        %v616 = vpack.c.bf16 %v615, %v615
        %s617 = scalar_lea.vmem [#allocation2], 192
        %v618 = vld [vmem:[%s617] sm:$0xf]
        %v619 = vld [vmem:[%s617 + $0x4] sm:$0xf]
        %v620 = vld [vmem:[%s617 + $0x8] sm:$0xf]
        %v621 = vld [vmem:[%s617 + $0xc] sm:$0xf]
        %v622 = vld [vmem:[%s617 + $0x10] sm:$0xf]
        %v623 = vld [vmem:[%s617 + $0x14] sm:$0xf]
        %v624 = vld [vmem:[%s617 + $0x18] sm:$0xf]
        %v625 = vld [vmem:[%s617 + $0x1c] sm:$0xf]
        %v626 = vld [vmem:[%s617 + $0x20] sm:$0xf]
        %v627 = vld [vmem:[%s617 + $0x24] sm:$0xf]
        %v628 = vld [vmem:[%s617 + $0x28] sm:$0xf]
        %v629 = vld [vmem:[%s617 + $0x2c] sm:$0xf]
        %v630 = vld [vmem:[%s617 + $0x30] sm:$0xf]
        %v631 = vld [vmem:[%s617 + $0x34] sm:$0xf]
        %v632 = vld [vmem:[%s617 + $0x38] sm:$0xf]
        %v633 = vld [vmem:[%s617 + $0x3c] sm:$0xf]
        %s634 = scalar_lea.vmem %s3, 4
        %v635 = vld [vmem:[%s634] sm:$0x1]
        %v637 = vlaneseq
        %v638 = vshrl.u32 %v637, 7
        %v639 = vsub.s32 0, %v638
        %v640 = vrot.slane %v635, %v639
        %v658 = vunpack.c.l.b16 %v618
        %v659 = vunpack.c.l.b16 %v619
        %v660 = vunpack.c.l.b16 %v620
        %v661 = vunpack.c.l.b16 %v621
        %v662 = vunpack.c.l.b16 %v622
        %v663 = vunpack.c.l.b16 %v623
        %v664 = vunpack.c.l.b16 %v624
        %v665 = vunpack.c.l.b16 %v625
        %v666 = vunpack.c.l.b16 %v626
        %v667 = vunpack.c.l.b16 %v627
        %v668 = vunpack.c.l.b16 %v628
        %v669 = vunpack.c.l.b16 %v629
        %v670 = vunpack.c.l.b16 %v630
        %v671 = vunpack.c.l.b16 %v631
        %v672 = vunpack.c.l.b16 %v632
        %v673 = vunpack.c.l.b16 %v633
        %v674 = vpack.c.b16 %v659, %v658
        %v675 = vpack.c.b16 %v661, %v660
        %v676 = vpack.c.b16 %v663, %v662
        %v677 = vpack.c.b16 %v665, %v664
        %v678 = vpack.c.b16 %v667, %v666
        %v679 = vpack.c.b16 %v669, %v668
        %v680 = vpack.c.b16 %v671, %v670
        %v681 = vpack.c.b16 %v673, %v672
        %690 = vmatprep.subr.bf16.mxu0 0
        %691 = vmatpush1.bf16.msra.mxu0 %v674
        %692 = vmatprep.subr.bf16.mxu0 0
        %693 = vmatpush1.bf16.msra.mxu0 %v675
        %694 = vmatprep.subr.bf16.mxu0 0
        %695 = vmatpush1.bf16.msra.mxu0 %v676
        %696 = vmatprep.subr.bf16.mxu0 0
        %697 = vmatpush1.bf16.msra.mxu0 %v677
        %698 = vmatprep.subr.bf16.mxu0 0
        %699 = vmatpush1.bf16.msra.mxu0 %v678
        %700 = vmatprep.subr.bf16.mxu0 0
        %701 = vmatpush1.bf16.msra.mxu0 %v679
        %702 = vmatprep.subr.bf16.mxu0 0
        %703 = vmatpush1.bf16.msra.mxu0 %v680
        %704 = vmatprep.subr.bf16.mxu0 0
        %705 = vmatpush1.bf16.msra.mxu0 %v681
        %706 = vmatprep.subr.bf16.mxu0 0
        %707 = vmatpush1.bf16.msra.mxu0 0
        %708 = vmatprep.subr.bf16.mxu0 0
        %709 = vmatpush1.bf16.msra.mxu0 0
        %710 = vmatprep.subr.bf16.mxu0 0
        %711 = vmatpush1.bf16.msra.mxu0 0
        %712 = vmatprep.subr.bf16.mxu0 0
        %713 = vmatpush1.bf16.msra.mxu0 0
        %714 = vmatprep.subr.bf16.mxu0 0
        %715 = vmatpush1.bf16.msra.mxu0 0
        %716 = vmatprep.subr.bf16.mxu0 0
        %717 = vmatpush1.bf16.msra.mxu0 0
        %718 = vmatprep.subr.bf16.mxu0 0
        %719 = vmatpush1.bf16.msra.mxu0 0
        %720 = vmatprep.subr.bf16.mxu0 0
        %721 = vmatpush1.bf16.msra.mxu0 0
        %722 = vmatprep.mubr.bf16.mxu0 0
        %723 = vmatmul.mubr.bf16.gmra.mrb[0].mxu0 %v616
        %v724 = vpop.f32.mrb[0].mxu0
        %v725 = vadd.f32 %v640, %v724
        %v726 = vpop.f32.mrb[0].mxu0
        %v727 = vpop.f32.mrb[0].mxu0
        %v728 = vpop.f32.mrb[0].mxu0
        %729 = vdwg.mxu0
        %v730 = vmul.f32 %v725, 0.2
        %v731 = vmax.f32 %v725, %v730
        %v732 = vpack.c.bf16 %v731, %v731
        %s733 = scalar_lea.vmem [#allocation2], 256
        %v734 = vld [vmem:[%s733] sm:$0xf]
        %v735 = vld [vmem:[%s733 + $0x4] sm:$0xf]
        %v736 = vld [vmem:[%s733 + $0x8] sm:$0xf]
        %v737 = vld [vmem:[%s733 + $0xc] sm:$0xf]
        %v738 = vld [vmem:[%s733 + $0x10] sm:$0xf]
        %v739 = vld [vmem:[%s733 + $0x14] sm:$0xf]
        %v740 = vld [vmem:[%s733 + $0x18] sm:$0xf]
        %v741 = vld [vmem:[%s733 + $0x1c] sm:$0xf]
        %v742 = vld [vmem:[%s733 + $0x20] sm:$0xf]
        %v743 = vld [vmem:[%s733 + $0x24] sm:$0xf]
        %v744 = vld [vmem:[%s733 + $0x28] sm:$0xf]
        %v745 = vld [vmem:[%s733 + $0x2c] sm:$0xf]
        %v746 = vld [vmem:[%s733 + $0x30] sm:$0xf]
        %v747 = vld [vmem:[%s733 + $0x34] sm:$0xf]
        %v748 = vld [vmem:[%s733 + $0x38] sm:$0xf]
        %v749 = vld [vmem:[%s733 + $0x3c] sm:$0xf]
        %s750 = scalar_lea.vmem %s3, 5
        %v751 = vld [vmem:[%s750] sm:$0x1]
        %v753 = vlaneseq
        %v754 = vshrl.u32 %v753, 7
        %v755 = vsub.s32 0, %v754
        %v756 = vrot.slane %v751, %v755
        %v774 = vunpack.c.l.b16 %v734
        %v775 = vunpack.c.l.b16 %v735
        %v776 = vunpack.c.l.b16 %v736
        %v777 = vunpack.c.l.b16 %v737
        %v778 = vunpack.c.l.b16 %v738
        %v779 = vunpack.c.l.b16 %v739
        %v780 = vunpack.c.l.b16 %v740
        %v781 = vunpack.c.l.b16 %v741
        %v782 = vunpack.c.l.b16 %v742
        %v783 = vunpack.c.l.b16 %v743
        %v784 = vunpack.c.l.b16 %v744
        %v785 = vunpack.c.l.b16 %v745
        %v786 = vunpack.c.l.b16 %v746
        %v787 = vunpack.c.l.b16 %v747
        %v788 = vunpack.c.l.b16 %v748
        %v789 = vunpack.c.l.b16 %v749
        %v790 = vpack.c.b16 %v775, %v774
        %v791 = vpack.c.b16 %v777, %v776
        %v792 = vpack.c.b16 %v779, %v778
        %v793 = vpack.c.b16 %v781, %v780
        %v794 = vpack.c.b16 %v783, %v782
        %v795 = vpack.c.b16 %v785, %v784
        %v796 = vpack.c.b16 %v787, %v786
        %v797 = vpack.c.b16 %v789, %v788
        %806 = vmatprep.subr.bf16.mxu0 0
        %807 = vmatpush1.bf16.msra.mxu0 %v790
        %808 = vmatprep.subr.bf16.mxu0 0
        %809 = vmatpush1.bf16.msra.mxu0 %v791
        %810 = vmatprep.subr.bf16.mxu0 0
        %811 = vmatpush1.bf16.msra.mxu0 %v792
        %812 = vmatprep.subr.bf16.mxu0 0
        %813 = vmatpush1.bf16.msra.mxu0 %v793
        %814 = vmatprep.subr.bf16.mxu0 0
        %815 = vmatpush1.bf16.msra.mxu0 %v794
        %816 = vmatprep.subr.bf16.mxu0 0
        %817 = vmatpush1.bf16.msra.mxu0 %v795
        %818 = vmatprep.subr.bf16.mxu0 0
        %819 = vmatpush1.bf16.msra.mxu0 %v796
        %820 = vmatprep.subr.bf16.mxu0 0
        %821 = vmatpush1.bf16.msra.mxu0 %v797
        %822 = vmatprep.subr.bf16.mxu0 0
        %823 = vmatpush1.bf16.msra.mxu0 0
        %824 = vmatprep.subr.bf16.mxu0 0
        %825 = vmatpush1.bf16.msra.mxu0 0
        %826 = vmatprep.subr.bf16.mxu0 0
        %827 = vmatpush1.bf16.msra.mxu0 0
        %828 = vmatprep.subr.bf16.mxu0 0
        %829 = vmatpush1.bf16.msra.mxu0 0
        %830 = vmatprep.subr.bf16.mxu0 0
        %831 = vmatpush1.bf16.msra.mxu0 0
        %832 = vmatprep.subr.bf16.mxu0 0
        %833 = vmatpush1.bf16.msra.mxu0 0
        %834 = vmatprep.subr.bf16.mxu0 0
        %835 = vmatpush1.bf16.msra.mxu0 0
        %836 = vmatprep.subr.bf16.mxu0 0
        %837 = vmatpush1.bf16.msra.mxu0 0
        %838 = vmatprep.mubr.bf16.mxu0 0
        %839 = vmatmul.mubr.bf16.gmra.mrb[0].mxu0 %v732
        %v840 = vpop.f32.mrb[0].mxu0
        %v841 = vadd.f32 %v756, %v840
        %v842 = vpop.f32.mrb[0].mxu0
        %v843 = vpop.f32.mrb[0].mxu0
        %v844 = vpop.f32.mrb[0].mxu0
        %845 = vdwg.mxu0
        %v846 = vmul.f32 %v841, 0.2
        %v847 = vmax.f32 %v841, %v846
        %v848 = vpack.c.bf16 %v847, %v847
        %s849 = scalar_lea.vmem [#allocation2], 320
        %v850 = vld [vmem:[%s849] sm:$0xf]
        %v851 = vld [vmem:[%s849 + $0x4] sm:$0xf]
        %v852 = vld [vmem:[%s849 + $0x8] sm:$0xf]
        %v853 = vld [vmem:[%s849 + $0xc] sm:$0xf]
        %v854 = vld [vmem:[%s849 + $0x10] sm:$0xf]
        %v855 = vld [vmem:[%s849 + $0x14] sm:$0xf]
        %v856 = vld [vmem:[%s849 + $0x18] sm:$0xf]
        %v857 = vld [vmem:[%s849 + $0x1c] sm:$0xf]
        %v858 = vld [vmem:[%s849 + $0x20] sm:$0xf]
        %v859 = vld [vmem:[%s849 + $0x24] sm:$0xf]
        %v860 = vld [vmem:[%s849 + $0x28] sm:$0xf]
        %v861 = vld [vmem:[%s849 + $0x2c] sm:$0xf]
        %v862 = vld [vmem:[%s849 + $0x30] sm:$0xf]
        %v863 = vld [vmem:[%s849 + $0x34] sm:$0xf]
        %v864 = vld [vmem:[%s849 + $0x38] sm:$0xf]
        %v865 = vld [vmem:[%s849 + $0x3c] sm:$0xf]
        %s866 = scalar_lea.vmem %s3, 6
        %v867 = vld [vmem:[%s866] sm:$0x1]
        %v869 = vlaneseq
        %v870 = vshrl.u32 %v869, 7
        %v871 = vsub.s32 0, %v870
        %v872 = vrot.slane %v867, %v871
        %v890 = vunpack.c.l.b16 %v850
        %v891 = vunpack.c.l.b16 %v851
        %v892 = vunpack.c.l.b16 %v852
        %v893 = vunpack.c.l.b16 %v853
        %v894 = vunpack.c.l.b16 %v854
        %v895 = vunpack.c.l.b16 %v855
        %v896 = vunpack.c.l.b16 %v856
        %v897 = vunpack.c.l.b16 %v857
        %v898 = vunpack.c.l.b16 %v858
        %v899 = vunpack.c.l.b16 %v859
        %v900 = vunpack.c.l.b16 %v860
        %v901 = vunpack.c.l.b16 %v861
        %v902 = vunpack.c.l.b16 %v862
        %v903 = vunpack.c.l.b16 %v863
        %v904 = vunpack.c.l.b16 %v864
        %v905 = vunpack.c.l.b16 %v865
        %v906 = vpack.c.b16 %v891, %v890
        %v907 = vpack.c.b16 %v893, %v892
        %v908 = vpack.c.b16 %v895, %v894
        %v909 = vpack.c.b16 %v897, %v896
        %v910 = vpack.c.b16 %v899, %v898
        %v911 = vpack.c.b16 %v901, %v900
        %v912 = vpack.c.b16 %v903, %v902
        %v913 = vpack.c.b16 %v905, %v904
        %922 = vmatprep.subr.bf16.mxu0 0
        %923 = vmatpush1.bf16.msra.mxu0 %v906
        %924 = vmatprep.subr.bf16.mxu0 0
        %925 = vmatpush1.bf16.msra.mxu0 %v907
        %926 = vmatprep.subr.bf16.mxu0 0
        %927 = vmatpush1.bf16.msra.mxu0 %v908
        %928 = vmatprep.subr.bf16.mxu0 0
        %929 = vmatpush1.bf16.msra.mxu0 %v909
        %930 = vmatprep.subr.bf16.mxu0 0
        %931 = vmatpush1.bf16.msra.mxu0 %v910
        %932 = vmatprep.subr.bf16.mxu0 0
        %933 = vmatpush1.bf16.msra.mxu0 %v911
        %934 = vmatprep.subr.bf16.mxu0 0
        %935 = vmatpush1.bf16.msra.mxu0 %v912
        %936 = vmatprep.subr.bf16.mxu0 0
        %937 = vmatpush1.bf16.msra.mxu0 %v913
        %938 = vmatprep.subr.bf16.mxu0 0
        %939 = vmatpush1.bf16.msra.mxu0 0
        %940 = vmatprep.subr.bf16.mxu0 0
        %941 = vmatpush1.bf16.msra.mxu0 0
        %942 = vmatprep.subr.bf16.mxu0 0
        %943 = vmatpush1.bf16.msra.mxu0 0
        %944 = vmatprep.subr.bf16.mxu0 0
        %945 = vmatpush1.bf16.msra.mxu0 0
        %946 = vmatprep.subr.bf16.mxu0 0
        %947 = vmatpush1.bf16.msra.mxu0 0
        %948 = vmatprep.subr.bf16.mxu0 0
        %949 = vmatpush1.bf16.msra.mxu0 0
        %950 = vmatprep.subr.bf16.mxu0 0
        %951 = vmatpush1.bf16.msra.mxu0 0
        %952 = vmatprep.subr.bf16.mxu0 0
        %953 = vmatpush1.bf16.msra.mxu0 0
        %954 = vmatprep.mubr.bf16.mxu0 0
        %955 = vmatmul.mubr.bf16.gmra.mrb[0].mxu0 %v848
        %v956 = vpop.f32.mrb[0].mxu0
        %v957 = vadd.f32 %v872, %v956
        %v958 = vpop.f32.mrb[0].mxu0
        %v959 = vpop.f32.mrb[0].mxu0
        %v960 = vpop.f32.mrb[0].mxu0
        %961 = vdwg.mxu0
        %vm962 = vcmask 23552
        %963 = vst.msk [vmem:[%s207] sm:$0xff] %vm962, %v957
        %p964 = scmp.lt.s32.totalorder %s16, 1
        %s965 = scalar_select %p964, %s16, 1
        %s966 = smul.addr %s965, 8
        %s967 = scalar_lea.vmem %s4, %s966
        // Predicated region
        $region41: #{tpu_custom_call.1} parent=35 // pred_check
          %p968 = pneg %p123
        $region42: #{tpu_custom_call.1} parent=35 // pred_check_branch
          %970 = sbr.rel (%p968) target = $region44
        $region43: #{tpu_custom_call.1} parent=35 // pred_region
          _
        $region44: #{tpu_custom_call.1} parent=35 // pred_fallthru
          _
      $region36: #{tpu_custom_call.1} parent=5 // pred_fallthru
        _
      %p971 = scmp.le.s32.totalorder 2, %s11
      // Predicated region
      $region45: #{tpu_custom_call.1} parent=5 // pred_check
        %p972 = pneg %p971
      $region46: #{tpu_custom_call.1} parent=5 // pred_check_branch
        %974 = sbr.rel (%p972) target = $region48
      $region47: #{tpu_custom_call.1} parent=5 // pred_region
        %s975 = ssub.s32 %s11, 2
        // Predicated region
        $region49: #{tpu_custom_call.1} parent=47 // pred_check
          %p976 = pneg %p129
        $region50: #{tpu_custom_call.1} parent=47 // pred_check_branch
          %978 = sbr.rel (%p976) target = $region52
        $region51: #{tpu_custom_call.1} parent=47 // pred_region
          %p979 = scmp.lt.s32.totalorder %s17, 1
          %s980 = scalar_select %p979, %s17, 1
          %s981 = smul.addr %s980, 8
          %s982 = scalar_lea.vmem %s4, %s981
        $region52: #{tpu_custom_call.1} parent=47 // pred_fallthru
          _
      $region48: #{tpu_custom_call.1} parent=5 // pred_fallthru
        _
    $region6: #{tpu_custom_call.1} parent=1 // loop_footer
      %s15 = sadd.s32 1, %s11
    $region7: #{tpu_custom_call.1} parent=1 // loop_footer_branch
      %10 = sbr.rel target = $region3
    $region8: #{tpu_custom_call.1} parent=1 // loop_exit
      _
    %983 = vsyncpa [#allocation3], 1
    %s984 = scalar_lea.sflag [#allocation3], 1
    %985 = vsyncpa %s984, 1

</llo_original>
